<compile_context>
chip_gen: v7x
topology: tpu7x:2x2x1
jax: 0.10.0
libtpu: 0.0.40
codegen_flags: <defaults>
</compile_context>

<pallas_src>
import functools

import jax
import jax.numpy as jnp
from jax.experimental import pallas as pl
from jax.experimental.pallas import tpu as pltpu


def _align8(n: int) -> int:
    return ((n + 7) // 8) * 8


def _align128(n: int) -> int:
    return ((n + 127) // 128) * 128


def prepare_decoder_params(params):
    """One-time (per-model) packing of all weights into a lane-dense f32 slab.

    The embedding table is folded into the GRU input weight:
      emb[x] @ W_ih[:, :E].T == onehot(x) @ (emb @ W_ih[:, :E].T)
    so the kernel never needs a separate embedding gather.
    """
    V, E = params['emb'].shape
    H = params['W_attn'].shape[0]
    lane = _align128(max(V, 3 * H, H))          # padded lane width (>= 128)
    assert 3 * H <= lane and V <= lane and H <= lane

    lay = {}
    off = 0

    def take(name, nrows):
        nonlocal off
        lay[name] = off
        off += _align8(nrows)

    take('wa', H)      # W_attn.T                         (H, H)  in lanes [:H]
    take('gie', V)     # emb @ W_ih[:, :E].T  (folded)    (V, 3H) in lanes [:3H]
    take('gic', H)     # W_ih[:, E:].T        (ctx part)  (H, 3H)
    take('ghh', H)     # W_hh.T                           (H, 3H)
    take('oh', H)      # W_out[:, :H].T       (h part)    (H, V)  in lanes [:V]
    take('oc', H)      # W_out[:, H:].T       (ctx part)  (H, V)
    take('bias', 4)    # rows 0..3: b_attn, b_ih, b_hh, b_out (one 8-row block)
    rows = off

    f32 = jnp.float32
    w_gie = jnp.dot(params['emb'].astype(f32),
                    params['W_ih'][:, :E].T.astype(f32),
                    precision=jax.lax.Precision.HIGHEST)       # (V, 3H)

    W = jnp.zeros((rows, lane), f32)
    W = W.at[lay['wa']:lay['wa'] + H, :H].set(params['W_attn'].T)
    W = W.at[lay['gie']:lay['gie'] + V, :3 * H].set(w_gie)
    W = W.at[lay['gic']:lay['gic'] + H, :3 * H].set(params['W_ih'][:, E:].T)
    W = W.at[lay['ghh']:lay['ghh'] + H, :3 * H].set(params['W_hh'].T)
    W = W.at[lay['oh']:lay['oh'] + H, :V].set(params['W_out'][:, :H].T)
    W = W.at[lay['oc']:lay['oc'] + H, :V].set(params['W_out'][:, H:].T)
    W = W.at[lay['bias'] + 0, :H].set(params['b_attn'])
    W = W.at[lay['bias'] + 1, :3 * H].set(params['b_ih'])
    W = W.at[lay['bias'] + 2, :3 * H].set(params['b_hh'])
    W = W.at[lay['bias'] + 3, :V].set(params['b_out'])
    # TODO(synk): a bfloat16 slab (f32 accumulation on every dot, cast back to
    # f32 right after the MXU so v5e's VPU/EUP stay in f32) would halve the
    # one-time weight DMA; kept f32 here for numerical headroom.
    return {'W': W, 'layout': lay, 'dims': (V, E, H, lane)}


def decoder_kernel(lay, S, B, H, V, tok_ref, hid0_ref, enc_ref, w_ref,
                   out_ref, h_ref):
    """One decoder step per grid index t; the hidden state is carried in
    h_ref (constant-index output block, resident in VMEM across the grid)."""
    t = pl.program_id(0)

    @pl.when(t == 0)
    def _init():
        h_ref[...] = hid0_ref[...]

    hid = h_ref[...]                      # (B, H) carried hidden state
    enc = enc_ref[...]                    # (S, B, H) resident in VMEM

    bias = w_ref[lay['bias']:lay['bias'] + 8, :]     # one aligned 8-row load
    ba = bias[0:1, :]
    bih = bias[1:2, :]
    bhh = bias[2:3, :]
    bo = bias[3:4, :]

    # ---- attention: one MXU pass over all S*B rows --------------------------
    #   energy[s,b,:] = tanh((hid[b] + enc[s,b]) @ W_attn.T + b_attn)
    #   scores[s,b]   = sum_h energy[s,b,h]
    wa = w_ref[lay['wa']:lay['wa'] + H, :]                        # (H, lane)
    x = (hid[None, :, :] + enc).reshape(S * B, H)                 # (S*B, H)
    e = jnp.tanh(jnp.dot(x, wa, preferred_element_type=jnp.float32) + ba)
    colsum = jnp.sum(e, axis=1, keepdims=True)    # (S*B, 1); padded lanes add tanh(0)=0

    # scatter into scores_t[b, s] = scores[s, b] (sublane-aligned 8-row slices)
    lane_ids = jax.lax.broadcasted_iota(jnp.int32, (B, S), 1)
    scores_t = jnp.zeros((B, S), jnp.float32)
    for s in range(S):
        scores_t = scores_t + jnp.where(lane_ids == s,
                                        colsum[s * B:(s + 1) * B, :], 0.0)

    # torch.softmax(scores, dim=1) == normalize scores_t over its sublane axis
    m = jnp.max(scores_t, axis=0, keepdims=True)
    ex = jnp.exp(scores_t - m)
    attn_t = ex / jnp.sum(ex, axis=0, keepdims=True)   # attn_t[b,s] = attn[s,b]

    # context[p,h] = sum_q attn[p,q] * enc[q,p,h]  (torch.bmm, valid as S == B)
    ctx = jnp.sum(attn_t[:, :, None] * enc, axis=0)               # (B, H)

    # ---- single-step GRU (torch gate order r, z, n), embedding folded -------
    # one-hot token rows from the scalar-prefetched ids (SMEM)
    sub_col = jax.lax.broadcasted_iota(jnp.int32, (B, 1), 0)
    tok_col = jnp.zeros((B, 1), jnp.int32)
    for b in range(B):
        tok_col = tok_col + jnp.where(sub_col == b, tok_ref[t, b], 0)
    lanes_v = jax.lax.broadcasted_iota(jnp.int32, (B, V), 1)
    onehot = jnp.where(lanes_v == tok_col, 1.0, 0.0)              # (B, V)

    wge = w_ref[lay['gie']:lay['gie'] + V, :]     # folded emb @ W_ih[:, :E].T
    wgc = w_ref[lay['gic']:lay['gic'] + H, :]
    wgh = w_ref[lay['ghh']:lay['ghh'] + H, :]

    gi = (jnp.dot(onehot, wge, preferred_element_type=jnp.float32)
          + jnp.dot(ctx, wgc, preferred_element_type=jnp.float32) + bih)
    gh = jnp.dot(hid, wgh, preferred_element_type=jnp.float32) + bhh

    r = jax.nn.sigmoid(gi[:, :H] + gh[:, :H])
    z = jax.nn.sigmoid(gi[:, H:2 * H] + gh[:, H:2 * H])
    n = jnp.tanh(gi[:, 2 * H:3 * H] + r * gh[:, 2 * H:3 * H])
    h_new = (1.0 - z) * n + z * hid                               # (B, H)
    h_ref[...] = h_new                        # carried to step t+1 (resident)

    # ---- output = cat([h_new, ctx]) @ W_out.T + b_out, lane-dense (B, lane) -
    woh = w_ref[lay['oh']:lay['oh'] + H, :]
    woc = w_ref[lay['oc']:lay['oc'] + H, :]
    out_ref[...] = (jnp.dot(h_new, woh, preferred_element_type=jnp.float32)
                    + jnp.dot(ctx, woc, preferred_element_type=jnp.float32)
                    + bo)


def decoder_decode(tokens, hidden, enc, prep):
    """Run T teacher-forced decoder steps in ONE pallas_call.

    tokens: (T, B) int32; hidden: (1, B, H); enc: (S, B, H) with S == B.
    Returns (logits (T, B, V), final hidden (1, B, H)).
    """
    V, E, H, lane = prep['dims']
    T, B = tokens.shape
    S = enc.shape[0]
    assert S == B, "torch.bmm in this module only type-checks when seq_len == batch"
    rows = prep['W'].shape[0]
    hid0 = hidden[0]

    grid_spec = pltpu.PrefetchScalarGridSpec(
        num_scalar_prefetch=1,                # token ids -> SMEM, read per step
        grid=(T,),
        in_specs=[
            pl.BlockSpec((B, H), lambda t, tok: (0, 0)),         # hid0  (resident)
            pl.BlockSpec((S, B, H), lambda t, tok: (0, 0, 0)),   # enc   (resident)
            pl.BlockSpec((rows, lane), lambda t, tok: (0, 0)),   # weight slab (resident)
        ],
        out_specs=(
            pl.BlockSpec((None, B, lane), lambda t, tok: (t, 0, 0)),  # per-step logits
            pl.BlockSpec((B, H), lambda t, tok: (0, 0)),              # carried hidden
        ),
    )
    flops_step = 2 * (S * B * H * lane + B * V * lane + 4 * B * H * lane)
    cost = pl.CostEstimate(
        flops=T * flops_step,
        transcendentals=T * (S * B * lane + B * S + 3 * B * H),
        bytes_accessed=(prep['W'].size + enc.size + hid0.size + tokens.size
                        + T * B * lane + B * H) * 4,
    )
    logits_pad, h_final = pl.pallas_call(
        functools.partial(decoder_kernel, prep['layout'], S, B, H, V),
        grid_spec=grid_spec,
        out_shape=(jax.ShapeDtypeStruct((T, B, lane), jnp.float32),
                   jax.ShapeDtypeStruct((B, H), jnp.float32)),
        compiler_params=pltpu.CompilerParams(
            dimension_semantics=("arbitrary",)),   # step axis carries state
        cost_estimate=cost,
    )(tokens.astype(jnp.int32), hid0, enc, prep['W'])
    # TODO(synk): for production vocab sizes (V~50k) tile the output projection
    # over a leading "parallel" vocab-tile grid axis (also feeds v7x's second
    # TensorCore), switch the one-hot embedding matmul to a DMA row gather, and
    # set vmem_limit_bytes for v7x's 64 MiB VMEM.
    return logits_pad[..., :V], h_final[None]


def decoder_step(x, hidden, enc, prep):
    """Single forward step == the PyTorch module's forward(x, hidden, enc)."""
    logits, h_new = decoder_decode(x[None, :], hidden, enc, prep)
    return logits[0], h_new


def decoder_ref(x, hidden, enc, params):
    """Pure-JAX transcription of the PyTorch forward, for verification."""
    emb = params['emb'][x]
    energy = jnp.tanh(jnp.einsum('sbh,oh->sbo', hidden + enc, params['W_attn'])
                      + params['b_attn'])
    scores = jnp.sum(energy, axis=2)                      # (S, B)
    attn = jax.nn.softmax(scores, axis=1)                 # softmax over dim=1
    context = jnp.einsum('ij,jih->ih', attn, enc)         # bmm with S == B
    hid = hidden[0]
    H = hid.shape[1]
    gin = jnp.concatenate([emb, context], axis=1)
    gi = gin @ params['W_ih'].T + params['b_ih']
    gh = hid @ params['W_hh'].T + params['b_hh']
    r = jax.nn.sigmoid(gi[:, :H] + gh[:, :H])
    z = jax.nn.sigmoid(gi[:, H:2 * H] + gh[:, H:2 * H])
    n = jnp.tanh(gi[:, 2 * H:] + r * gh[:, 2 * H:])
    h_new = (1.0 - z) * n + z * hid
    out = jnp.concatenate([h_new, context], axis=1) @ params['W_out'].T + params['b_out']
    return out, h_new[None]


if __name__ == "__main__":
    B = S = 8          # seq_len must equal batch for the module's bmm to work
    E = 16             # embed_dim
    H = 32             # hidden_size
    V = 64             # vocab_size
    T = 4              # decode steps for the fused-loop demo

    key = jax.random.PRNGKey(0)
    ks = jax.random.split(key, 12)
    params = {
        'emb':    jax.random.normal(ks[0], (V, E), jnp.float32) * 0.1,
        'W_attn': jax.random.normal(ks[1], (H, H), jnp.float32) * 0.1,
        'b_attn': jax.random.normal(ks[2], (H,), jnp.float32) * 0.1,
        'W_ih':   jax.random.normal(ks[3], (3 * H, E + H), jnp.float32) * 0.1,
        'W_hh':   jax.random.normal(ks[4], (3 * H, H), jnp.float32) * 0.1,
        'b_ih':   jax.random.normal(ks[5], (3 * H,), jnp.float32) * 0.1,
        'b_hh':   jax.random.normal(ks[6], (3 * H,), jnp.float32) * 0.1,
        'W_out':  jax.random.normal(ks[7], (V, 2 * H), jnp.float32) * 0.1,
        'b_out':  jax.random.normal(ks[8], (V,), jnp.float32) * 0.1,
    }
    x = jax.random.randint(ks[9], (B,), 0, V, dtype=jnp.int32)
    hidden = jax.random.normal(ks[10], (1, B, H), jnp.float32) * 0.1
    enc = jax.random.normal(ks[11], (S, B, H), jnp.float32) * 0.1

    prep = prepare_decoder_params(params)       # hoisted: once per model

    # 1) single forward step (== the PyTorch module's forward)
    out, h_new = decoder_step(x, hidden, enc, prep)
    jax.block_until_ready((out, h_new))
    out_ref_v, h_ref_v = decoder_ref(x, hidden, enc, params)
    assert out.shape == (B, V) and h_new.shape == (1, B, H)
    assert jnp.allclose(out, out_ref_v, atol=1e-2, rtol=1e-2)
    assert jnp.allclose(h_new, h_ref_v, atol=1e-2, rtol=1e-2)

    # 2) fused T-step decode: weights/enc DMA'd once, hidden carried in VMEM
    tokens = jax.random.randint(jax.random.PRNGKey(1), (T, B), 0, V,
                                dtype=jnp.int32)
    logits, h_fin = decoder_decode(tokens, hidden, enc, prep)
    jax.block_until_ready((logits, h_fin))
    h_loop = hidden
    for t in range(T):
        o_r, h_loop = decoder_ref(tokens[t], h_loop, enc, params)
        assert jnp.allclose(logits[t], o_r, atol=1e-2, rtol=1e-2)
    assert jnp.allclose(h_fin, h_loop, atol=1e-2, rtol=1e-2)

    print("KERNEL_OK")
</pallas_src>

<mosaic_0001>
module attributes {stable_mosaic.version = 11 : i64} {
  func.func @decoder_kernel(%arg0: i32, %arg1: memref<1x8xi32, #tpu.memory_space<smem>>, %arg2: memref<8x32xf32, #tpu.memory_space<vmem>>, %arg3: memref<8x8x32xf32, #tpu.memory_space<vmem>>, %arg4: memref<232x128xf32, #tpu.memory_space<vmem>>, %arg5: memref<1x8x128xf32, #tpu.memory_space<vmem>>, %arg6: memref<8x32xf32, #tpu.memory_space<vmem>>) attributes {dimension_semantics = [#tpu.dimension_semantics<arbitrary>], iteration_bounds = array<i64: 1>, scalar_prefetch = 1 : i64, scratch_operands = 0 : i64, tpu.core_type = #tpu.core_type<tc>, window_params = [{pipeline_mode = #tpu.pipeline_mode<synchronous>, transform_indices = @transform_0, window_bounds = array<i64: 8, 32>}, {pipeline_mode = #tpu.pipeline_mode<synchronous>, transform_indices = @transform_1, window_bounds = array<i64: 8, 8, 32>}, {pipeline_mode = #tpu.pipeline_mode<synchronous>, transform_indices = @transform_2, window_bounds = array<i64: 232, 128>}, {transform_indices = @transform_3, window_bounds = array<i64: 1, 8, 128>}, {pipeline_mode = #tpu.pipeline_mode<synchronous>, transform_indices = @transform_4, window_bounds = array<i64: 8, 32>}]} {
    %c0_i32 = arith.constant 0 : i32
    %0 = arith.cmpi eq, %arg0, %c0_i32 : i32
    %1 = arith.extui %0 : i1 to i32
    %c0_i32_0 = arith.constant 0 : i32
    %2 = arith.cmpi ne, %1, %c0_i32_0 : i32
    scf.if %2 {
      %c0_60 = arith.constant 0 : index
      %c0_61 = arith.constant 0 : index
      %220 = vector.load %arg2[%c0_60, %c0_61] : memref<8x32xf32, #tpu.memory_space<vmem>>, vector<8x32xf32>
      %c0_62 = arith.constant 0 : index
      %c0_63 = arith.constant 0 : index
      %221 = vector.load %arg6[%c0_62, %c0_63] : memref<8x32xf32, #tpu.memory_space<vmem>>, vector<8x32xf32>
      tpu.vector_store %arg6[%c0_62, %c0_63], %220 {strides = array<i32>} : memref<8x32xf32, #tpu.memory_space<vmem>>, vector<8x32xf32>,
    } else {
    }
    %c0 = arith.constant 0 : index
    %c0_1 = arith.constant 0 : index
    %3 = vector.load %arg6[%c0, %c0_1] : memref<8x32xf32, #tpu.memory_space<vmem>>, vector<8x32xf32>
    %c0_2 = arith.constant 0 : index
    %c0_3 = arith.constant 0 : index
    %c0_4 = arith.constant 0 : index
    %4 = vector.load %arg3[%c0_2, %c0_3, %c0_4] : memref<8x8x32xf32, #tpu.memory_space<vmem>>, vector<8x8x32xf32>
    %c224 = arith.constant 224 : index
    %c0_5 = arith.constant 0 : index
    %5 = vector.load %arg4[%c224, %c0_5] : memref<232x128xf32, #tpu.memory_space<vmem>>, vector<8x128xf32>
    %6 = vector.extract_strided_slice %5 {offsets = [0, 0], sizes = [1, 128], strides = [1, 1]} : vector<8x128xf32> to vector<1x128xf32>
    %7 = vector.extract_strided_slice %5 {offsets = [1, 0], sizes = [1, 128], strides = [1, 1]} : vector<8x128xf32> to vector<1x128xf32>
    %8 = vector.extract_strided_slice %5 {offsets = [2, 0], sizes = [1, 128], strides = [1, 1]} : vector<8x128xf32> to vector<1x128xf32>
    %9 = vector.extract_strided_slice %5 {offsets = [3, 0], sizes = [1, 128], strides = [1, 1]} : vector<8x128xf32> to vector<1x128xf32>
    %c0_6 = arith.constant 0 : index
    %c0_7 = arith.constant 0 : index
    %10 = vector.load %arg4[%c0_6, %c0_7] : memref<232x128xf32, #tpu.memory_space<vmem>>, vector<32x128xf32>
    %11 = vector.shape_cast %3 : vector<8x32xf32> to vector<1x8x32xf32>
    %12 = vector.broadcast %11 : vector<1x8x32xf32> to vector<8x8x32xf32>
    %13 = arith.addf %12, %4 : vector<8x8x32xf32>
    %14 = vector.shape_cast %13 : vector<8x8x32xf32> to vector<64x32xf32>
    %cst = arith.constant dense<0.000000e+00> : vector<64x128xf32>
    %15 = tpu.matmul %14, %10, %cst {dimension_numbers = #tpu.dot_dimension_numbers<[1], [0], [0], [1], [0, 0, 1, 1], [], []>} : vector<64x32xf32>, vector<32x128xf32>, vector<64x128xf32> -> vector<64x128xf32>
    %16 = vector.broadcast %6 : vector<1x128xf32> to vector<64x128xf32>
    %17 = arith.addf %15, %16 : vector<64x128xf32>
    %18 = math.tanh %17 : vector<64x128xf32>
    %cst_8 = arith.constant dense<0.000000e+00> : vector<64xf32>
    %19 = vector.multi_reduction <add>, %18, %cst_8 [1] : vector<64x128xf32> to vector<64xf32>
    %20 = vector.shape_cast %19 : vector<64xf32> to vector<64x1xf32>
    %21 = tpu.iota {dimensions = array<i32: 1>} : vector<8x8xi32>
    %cst_9 = arith.constant 0.000000e+00 : f32
    %22 = vector.broadcast %cst_9 : f32 to vector<8x8xf32>
    %c0_i32_10 = arith.constant 0 : i32
    %23 = vector.broadcast %c0_i32_10 : i32 to vector<8x8xi32>
    %24 = arith.cmpi eq, %21, %23 : vector<8x8xi32>
    %25 = vector.extract_strided_slice %20 {offsets = [0, 0], sizes = [8, 1], strides = [1, 1]} : vector<64x1xf32> to vector<8x1xf32>
    %cst_11 = arith.constant 0.000000e+00 : f32
    %26 = vector.shape_cast %25 : vector<8x1xf32> to vector<8x1xf32>
    %27 = vector.broadcast %26 : vector<8x1xf32> to vector<8x8xf32>
    %28 = vector.broadcast %cst_11 : f32 to vector<8x8xf32>
    %29 = arith.select %24, %27, %28 : vector<8x8xi1>, vector<8x8xf32>
    %30 = arith.addf %22, %29 : vector<8x8xf32>
    %c1_i32 = arith.constant 1 : i32
    %31 = vector.broadcast %c1_i32 : i32 to vector<8x8xi32>
    %32 = arith.cmpi eq, %21, %31 : vector<8x8xi32>
    %33 = vector.extract_strided_slice %20 {offsets = [8, 0], sizes = [8, 1], strides = [1, 1]} : vector<64x1xf32> to vector<8x1xf32>
    %cst_12 = arith.constant 0.000000e+00 : f32
    %34 = vector.shape_cast %33 : vector<8x1xf32> to vector<8x1xf32>
    %35 = vector.broadcast %34 : vector<8x1xf32> to vector<8x8xf32>
    %36 = vector.broadcast %cst_12 : f32 to vector<8x8xf32>
    %37 = arith.select %32, %35, %36 : vector<8x8xi1>, vector<8x8xf32>
    %38 = arith.addf %30, %37 : vector<8x8xf32>
    %c2_i32 = arith.constant 2 : i32
    %39 = vector.broadcast %c2_i32 : i32 to vector<8x8xi32>
    %40 = arith.cmpi eq, %21, %39 : vector<8x8xi32>
    %41 = vector.extract_strided_slice %20 {offsets = [16, 0], sizes = [8, 1], strides = [1, 1]} : vector<64x1xf32> to vector<8x1xf32>
    %cst_13 = arith.constant 0.000000e+00 : f32
    %42 = vector.shape_cast %41 : vector<8x1xf32> to vector<8x1xf32>
    %43 = vector.broadcast %42 : vector<8x1xf32> to vector<8x8xf32>
    %44 = vector.broadcast %cst_13 : f32 to vector<8x8xf32>
    %45 = arith.select %40, %43, %44 : vector<8x8xi1>, vector<8x8xf32>
    %46 = arith.addf %38, %45 : vector<8x8xf32>
    %c3_i32 = arith.constant 3 : i32
    %47 = vector.broadcast %c3_i32 : i32 to vector<8x8xi32>
    %48 = arith.cmpi eq, %21, %47 : vector<8x8xi32>
    %49 = vector.extract_strided_slice %20 {offsets = [24, 0], sizes = [8, 1], strides = [1, 1]} : vector<64x1xf32> to vector<8x1xf32>
    %cst_14 = arith.constant 0.000000e+00 : f32
    %50 = vector.shape_cast %49 : vector<8x1xf32> to vector<8x1xf32>
    %51 = vector.broadcast %50 : vector<8x1xf32> to vector<8x8xf32>
    %52 = vector.broadcast %cst_14 : f32 to vector<8x8xf32>
    %53 = arith.select %48, %51, %52 : vector<8x8xi1>, vector<8x8xf32>
    %54 = arith.addf %46, %53 : vector<8x8xf32>
    %c4_i32 = arith.constant 4 : i32
    %55 = vector.broadcast %c4_i32 : i32 to vector<8x8xi32>
    %56 = arith.cmpi eq, %21, %55 : vector<8x8xi32>
    %57 = vector.extract_strided_slice %20 {offsets = [32, 0], sizes = [8, 1], strides = [1, 1]} : vector<64x1xf32> to vector<8x1xf32>
    %cst_15 = arith.constant 0.000000e+00 : f32
    %58 = vector.shape_cast %57 : vector<8x1xf32> to vector<8x1xf32>
    %59 = vector.broadcast %58 : vector<8x1xf32> to vector<8x8xf32>
    %60 = vector.broadcast %cst_15 : f32 to vector<8x8xf32>
    %61 = arith.select %56, %59, %60 : vector<8x8xi1>, vector<8x8xf32>
    %62 = arith.addf %54, %61 : vector<8x8xf32>
    %c5_i32 = arith.constant 5 : i32
    %63 = vector.broadcast %c5_i32 : i32 to vector<8x8xi32>
    %64 = arith.cmpi eq, %21, %63 : vector<8x8xi32>
    %65 = vector.extract_strided_slice %20 {offsets = [40, 0], sizes = [8, 1], strides = [1, 1]} : vector<64x1xf32> to vector<8x1xf32>
    %cst_16 = arith.constant 0.000000e+00 : f32
    %66 = vector.shape_cast %65 : vector<8x1xf32> to vector<8x1xf32>
    %67 = vector.broadcast %66 : vector<8x1xf32> to vector<8x8xf32>
    %68 = vector.broadcast %cst_16 : f32 to vector<8x8xf32>
    %69 = arith.select %64, %67, %68 : vector<8x8xi1>, vector<8x8xf32>
    %70 = arith.addf %62, %69 : vector<8x8xf32>
    %c6_i32 = arith.constant 6 : i32
    %71 = vector.broadcast %c6_i32 : i32 to vector<8x8xi32>
    %72 = arith.cmpi eq, %21, %71 : vector<8x8xi32>
    %73 = vector.extract_strided_slice %20 {offsets = [48, 0], sizes = [8, 1], strides = [1, 1]} : vector<64x1xf32> to vector<8x1xf32>
    %cst_17 = arith.constant 0.000000e+00 : f32
    %74 = vector.shape_cast %73 : vector<8x1xf32> to vector<8x1xf32>
    %75 = vector.broadcast %74 : vector<8x1xf32> to vector<8x8xf32>
    %76 = vector.broadcast %cst_17 : f32 to vector<8x8xf32>
    %77 = arith.select %72, %75, %76 : vector<8x8xi1>, vector<8x8xf32>
    %78 = arith.addf %70, %77 : vector<8x8xf32>
    %c7_i32 = arith.constant 7 : i32
    %79 = vector.broadcast %c7_i32 : i32 to vector<8x8xi32>
    %80 = arith.cmpi eq, %21, %79 : vector<8x8xi32>
    %81 = vector.extract_strided_slice %20 {offsets = [56, 0], sizes = [8, 1], strides = [1, 1]} : vector<64x1xf32> to vector<8x1xf32>
    %cst_18 = arith.constant 0.000000e+00 : f32
    %82 = vector.shape_cast %81 : vector<8x1xf32> to vector<8x1xf32>
    %83 = vector.broadcast %82 : vector<8x1xf32> to vector<8x8xf32>
    %84 = vector.broadcast %cst_18 : f32 to vector<8x8xf32>
    %85 = arith.select %80, %83, %84 : vector<8x8xi1>, vector<8x8xf32>
    %86 = arith.addf %78, %85 : vector<8x8xf32>
    %cst_19 = arith.constant dense<0xFF800000> : vector<8xf32>
    %87 = vector.multi_reduction <maximumf>, %86, %cst_19 [0] : vector<8x8xf32> to vector<8xf32>
    %88 = vector.shape_cast %87 : vector<8xf32> to vector<1x8xf32>
    %89 = vector.broadcast %88 : vector<1x8xf32> to vector<8x8xf32>
    %90 = arith.subf %86, %89 : vector<8x8xf32>
    %91 = math.exp %90 : vector<8x8xf32>
    %cst_20 = arith.constant dense<0.000000e+00> : vector<8xf32>
    %92 = vector.multi_reduction <add>, %91, %cst_20 [0] : vector<8x8xf32> to vector<8xf32>
    %93 = vector.shape_cast %92 : vector<8xf32> to vector<1x8xf32>
    %94 = vector.broadcast %93 : vector<1x8xf32> to vector<8x8xf32>
    %95 = arith.divf %91, %94 : vector<8x8xf32>
    %96 = vector.shape_cast %95 : vector<8x8xf32> to vector<8x8x1xf32>
    %97 = vector.broadcast %96 : vector<8x8x1xf32> to vector<8x8x32xf32>
    %98 = arith.mulf %97, %4 : vector<8x8x32xf32>
    %cst_21 = arith.constant dense<0.000000e+00> : vector<8x32xf32>
    %99 = vector.multi_reduction <add>, %98, %cst_21 [0] : vector<8x8x32xf32> to vector<8x32xf32>
    %100 = tpu.iota {dimensions = array<i32: 0>} : vector<8x1xi32>
    %c0_i32_22 = arith.constant 0 : i32
    %101 = vector.broadcast %c0_i32_22 : i32 to vector<8x1xi32>
    %c0_i32_23 = arith.constant 0 : i32
    %102 = vector.broadcast %c0_i32_23 : i32 to vector<8x1xi32>
    %103 = arith.cmpi eq, %100, %102 : vector<8x1xi32>
    %104 = arith.index_cast %arg0 : i32 to index
    %c0_24 = arith.constant 0 : index
    %105 = memref.load %arg1[%104, %c0_24] : memref<1x8xi32, #tpu.memory_space<smem>>
    %c0_i32_25 = arith.constant 0 : i32
    %106 = vector.broadcast %105 : i32 to vector<8x1xi32>
    %107 = vector.broadcast %c0_i32_25 : i32 to vector<8x1xi32>
    %108 = arith.select %103, %106, %107 : vector<8x1xi1>, vector<8x1xi32>
    %109 = arith.addi %101, %108 : vector<8x1xi32>
    %c1_i32_26 = arith.constant 1 : i32
    %110 = vector.broadcast %c1_i32_26 : i32 to vector<8x1xi32>
    %111 = arith.cmpi eq, %100, %110 : vector<8x1xi32>
    %112 = arith.index_cast %arg0 : i32 to index
    %c1 = arith.constant 1 : index
    %113 = memref.load %arg1[%112, %c1] : memref<1x8xi32, #tpu.memory_space<smem>>
    %c0_i32_27 = arith.constant 0 : i32
    %114 = vector.broadcast %113 : i32 to vector<8x1xi32>
    %115 = vector.broadcast %c0_i32_27 : i32 to vector<8x1xi32>
    %116 = arith.select %111, %114, %115 : vector<8x1xi1>, vector<8x1xi32>
    %117 = arith.addi %109, %116 : vector<8x1xi32>
    %c2_i32_28 = arith.constant 2 : i32
    %118 = vector.broadcast %c2_i32_28 : i32 to vector<8x1xi32>
    %119 = arith.cmpi eq, %100, %118 : vector<8x1xi32>
    %120 = arith.index_cast %arg0 : i32 to index
    %c2 = arith.constant 2 : index
    %121 = memref.load %arg1[%120, %c2] : memref<1x8xi32, #tpu.memory_space<smem>>
    %c0_i32_29 = arith.constant 0 : i32
    %122 = vector.broadcast %121 : i32 to vector<8x1xi32>
    %123 = vector.broadcast %c0_i32_29 : i32 to vector<8x1xi32>
    %124 = arith.select %119, %122, %123 : vector<8x1xi1>, vector<8x1xi32>
    %125 = arith.addi %117, %124 : vector<8x1xi32>
    %c3_i32_30 = arith.constant 3 : i32
    %126 = vector.broadcast %c3_i32_30 : i32 to vector<8x1xi32>
    %127 = arith.cmpi eq, %100, %126 : vector<8x1xi32>
    %128 = arith.index_cast %arg0 : i32 to index
    %c3 = arith.constant 3 : index
    %129 = memref.load %arg1[%128, %c3] : memref<1x8xi32, #tpu.memory_space<smem>>
    %c0_i32_31 = arith.constant 0 : i32
    %130 = vector.broadcast %129 : i32 to vector<8x1xi32>
    %131 = vector.broadcast %c0_i32_31 : i32 to vector<8x1xi32>
    %132 = arith.select %127, %130, %131 : vector<8x1xi1>, vector<8x1xi32>
    %133 = arith.addi %125, %132 : vector<8x1xi32>
    %c4_i32_32 = arith.constant 4 : i32
    %134 = vector.broadcast %c4_i32_32 : i32 to vector<8x1xi32>
    %135 = arith.cmpi eq, %100, %134 : vector<8x1xi32>
    %136 = arith.index_cast %arg0 : i32 to index
    %c4 = arith.constant 4 : index
    %137 = memref.load %arg1[%136, %c4] : memref<1x8xi32, #tpu.memory_space<smem>>
    %c0_i32_33 = arith.constant 0 : i32
    %138 = vector.broadcast %137 : i32 to vector<8x1xi32>
    %139 = vector.broadcast %c0_i32_33 : i32 to vector<8x1xi32>
    %140 = arith.select %135, %138, %139 : vector<8x1xi1>, vector<8x1xi32>
    %141 = arith.addi %133, %140 : vector<8x1xi32>
    %c5_i32_34 = arith.constant 5 : i32
    %142 = vector.broadcast %c5_i32_34 : i32 to vector<8x1xi32>
    %143 = arith.cmpi eq, %100, %142 : vector<8x1xi32>
    %144 = arith.index_cast %arg0 : i32 to index
    %c5 = arith.constant 5 : index
    %145 = memref.load %arg1[%144, %c5] : memref<1x8xi32, #tpu.memory_space<smem>>
    %c0_i32_35 = arith.constant 0 : i32
    %146 = vector.broadcast %145 : i32 to vector<8x1xi32>
    %147 = vector.broadcast %c0_i32_35 : i32 to vector<8x1xi32>
    %148 = arith.select %143, %146, %147 : vector<8x1xi1>, vector<8x1xi32>
    %149 = arith.addi %141, %148 : vector<8x1xi32>
    %c6_i32_36 = arith.constant 6 : i32
    %150 = vector.broadcast %c6_i32_36 : i32 to vector<8x1xi32>
    %151 = arith.cmpi eq, %100, %150 : vector<8x1xi32>
    %152 = arith.index_cast %arg0 : i32 to index
    %c6 = arith.constant 6 : index
    %153 = memref.load %arg1[%152, %c6] : memref<1x8xi32, #tpu.memory_space<smem>>
    %c0_i32_37 = arith.constant 0 : i32
    %154 = vector.broadcast %153 : i32 to vector<8x1xi32>
    %155 = vector.broadcast %c0_i32_37 : i32 to vector<8x1xi32>
    %156 = arith.select %151, %154, %155 : vector<8x1xi1>, vector<8x1xi32>
    %157 = arith.addi %149, %156 : vector<8x1xi32>
    %c7_i32_38 = arith.constant 7 : i32
    %158 = vector.broadcast %c7_i32_38 : i32 to vector<8x1xi32>
    %159 = arith.cmpi eq, %100, %158 : vector<8x1xi32>
    %160 = arith.index_cast %arg0 : i32 to index
    %c7 = arith.constant 7 : index
    %161 = memref.load %arg1[%160, %c7] : memref<1x8xi32, #tpu.memory_space<smem>>
    %c0_i32_39 = arith.constant 0 : i32
    %162 = vector.broadcast %161 : i32 to vector<8x1xi32>
    %163 = vector.broadcast %c0_i32_39 : i32 to vector<8x1xi32>
    %164 = arith.select %159, %162, %163 : vector<8x1xi1>, vector<8x1xi32>
    %165 = arith.addi %157, %164 : vector<8x1xi32>
    %166 = tpu.iota {dimensions = array<i32: 1>} : vector<8x64xi32>
    %167 = vector.broadcast %165 : vector<8x1xi32> to vector<8x64xi32>
    %168 = arith.cmpi eq, %166, %167 : vector<8x64xi32>
    %cst_40 = arith.constant 1.000000e+00 : f32
    %cst_41 = arith.constant 0.000000e+00 : f32
    %169 = vector.broadcast %cst_40 : f32 to vector<8x64xf32>
    %170 = vector.broadcast %cst_41 : f32 to vector<8x64xf32>
    %171 = arith.select %168, %169, %170 : vector<8x64xi1>, vector<8x64xf32>
    %c32 = arith.constant 32 : index
    %c0_42 = arith.constant 0 : index
    %172 = vector.load %arg4[%c32, %c0_42] : memref<232x128xf32, #tpu.memory_space<vmem>>, vector<64x128xf32>
    %c96 = arith.constant 96 : index
    %c0_43 = arith.constant 0 : index
    %173 = vector.load %arg4[%c96, %c0_43] : memref<232x128xf32, #tpu.memory_space<vmem>>, vector<32x128xf32>
    %c128 = arith.constant 128 : index
    %c0_44 = arith.constant 0 : index
    %174 = vector.load %arg4[%c128, %c0_44] : memref<232x128xf32, #tpu.memory_space<vmem>>, vector<32x128xf32>
    %cst_45 = arith.constant dense<0.000000e+00> : vector<8x128xf32>
    %175 = tpu.matmul %171, %172, %cst_45 {dimension_numbers = #tpu.dot_dimension_numbers<[1], [0], [0], [1], [0, 0, 1, 1], [], []>} : vector<8x64xf32>, vector<64x128xf32>, vector<8x128xf32> -> vector<8x128xf32>
    %cst_46 = arith.constant dense<0.000000e+00> : vector<8x128xf32>
    %176 = tpu.matmul %99, %173, %cst_46 {dimension_numbers = #tpu.dot_dimension_numbers<[1], [0], [0], [1], [0, 0, 1, 1], [], []>} : vector<8x32xf32>, vector<32x128xf32>, vector<8x128xf32> -> vector<8x128xf32>
    %177 = arith.addf %175, %176 : vector<8x128xf32>
    %178 = vector.broadcast %7 : vector<1x128xf32> to vector<8x128xf32>
    %179 = arith.addf %177, %178 : vector<8x128xf32>
    %cst_47 = arith.constant dense<0.000000e+00> : vector<8x128xf32>
    %180 = tpu.matmul %3, %174, %cst_47 {dimension_numbers = #tpu.dot_dimension_numbers<[1], [0], [0], [1], [0, 0, 1, 1], [], []>} : vector<8x32xf32>, vector<32x128xf32>, vector<8x128xf32> -> vector<8x128xf32>
    %181 = vector.broadcast %8 : vector<1x128xf32> to vector<8x128xf32>
    %182 = arith.addf %180, %181 : vector<8x128xf32>
    %183 = vector.extract_strided_slice %179 {offsets = [0, 0], sizes = [8, 32], strides = [1, 1]} : vector<8x128xf32> to vector<8x32xf32>
    %184 = vector.extract_strided_slice %182 {offsets = [0, 0], sizes = [8, 32], strides = [1, 1]} : vector<8x128xf32> to vector<8x32xf32>
    %185 = arith.addf %183, %184 : vector<8x32xf32>
    %186 = arith.negf %185 : vector<8x32xf32>
    %187 = math.exp %186 : vector<8x32xf32>
    %cst_48 = arith.constant 1.000000e+00 : f32
    %188 = vector.broadcast %cst_48 : f32 to vector<8x32xf32>
    %189 = arith.addf %188, %187 : vector<8x32xf32>
    %190 = arith.divf %188, %189 : vector<8x32xf32>
    %191 = vector.extract_strided_slice %179 {offsets = [0, 32], sizes = [8, 32], strides = [1, 1]} : vector<8x128xf32> to vector<8x32xf32>
    %192 = vector.extract_strided_slice %182 {offsets = [0, 32], sizes = [8, 32], strides = [1, 1]} : vector<8x128xf32> to vector<8x32xf32>
    %193 = arith.addf %191, %192 : vector<8x32xf32>
    %194 = arith.negf %193 : vector<8x32xf32>
    %195 = math.exp %194 : vector<8x32xf32>
    %cst_49 = arith.constant 1.000000e+00 : f32
    %196 = vector.broadcast %cst_49 : f32 to vector<8x32xf32>
    %197 = arith.addf %196, %195 : vector<8x32xf32>
    %198 = arith.divf %196, %197 : vector<8x32xf32>
    %199 = vector.extract_strided_slice %179 {offsets = [0, 64], sizes = [8, 32], strides = [1, 1]} : vector<8x128xf32> to vector<8x32xf32>
    %200 = vector.extract_strided_slice %182 {offsets = [0, 64], sizes = [8, 32], strides = [1, 1]} : vector<8x128xf32> to vector<8x32xf32>
    %201 = arith.mulf %190, %200 : vector<8x32xf32>
    %202 = arith.addf %199, %201 : vector<8x32xf32>
    %203 = math.tanh %202 : vector<8x32xf32>
    %cst_50 = arith.constant 1.000000e+00 : f32
    %204 = vector.broadcast %cst_50 : f32 to vector<8x32xf32>
    %205 = arith.subf %204, %198 : vector<8x32xf32>
    %206 = arith.mulf %205, %203 : vector<8x32xf32>
    %207 = arith.mulf %198, %3 : vector<8x32xf32>
    %208 = arith.addf %206, %207 : vector<8x32xf32>
    %c0_51 = arith.constant 0 : index
    %c0_52 = arith.constant 0 : index
    %209 = vector.load %arg6[%c0_51, %c0_52] : memref<8x32xf32, #tpu.memory_space<vmem>>, vector<8x32xf32>
    tpu.vector_store %arg6[%c0_51, %c0_52], %208 {strides = array<i32>} : memref<8x32xf32, #tpu.memory_space<vmem>>, vector<8x32xf32>,
    %c160 = arith.constant 160 : index
    %c0_53 = arith.constant 0 : index
    %210 = vector.load %arg4[%c160, %c0_53] : memref<232x128xf32, #tpu.memory_space<vmem>>, vector<32x128xf32>
    %c192 = arith.constant 192 : index
    %c0_54 = arith.constant 0 : index
    %211 = vector.load %arg4[%c192, %c0_54] : memref<232x128xf32, #tpu.memory_space<vmem>>, vector<32x128xf32>
    %cst_55 = arith.constant dense<0.000000e+00> : vector<8x128xf32>
    %212 = tpu.matmul %208, %210, %cst_55 {dimension_numbers = #tpu.dot_dimension_numbers<[1], [0], [0], [1], [0, 0, 1, 1], [], []>} : vector<8x32xf32>, vector<32x128xf32>, vector<8x128xf32> -> vector<8x128xf32>
    %cst_56 = arith.constant dense<0.000000e+00> : vector<8x128xf32>
    %213 = tpu.matmul %99, %211, %cst_56 {dimension_numbers = #tpu.dot_dimension_numbers<[1], [0], [0], [1], [0, 0, 1, 1], [], []>} : vector<8x32xf32>, vector<32x128xf32>, vector<8x128xf32> -> vector<8x128xf32>
    %214 = arith.addf %212, %213 : vector<8x128xf32>
    %215 = vector.broadcast %9 : vector<1x128xf32> to vector<8x128xf32>
    %216 = arith.addf %214, %215 : vector<8x128xf32>
    %c0_57 = arith.constant 0 : index
    %c0_58 = arith.constant 0 : index
    %c0_59 = arith.constant 0 : index
    %217 = vector.load %arg5[%c0_57, %c0_58, %c0_59] : memref<1x8x128xf32, #tpu.memory_space<vmem>>, vector<1x8x128xf32>
    %218 = vector.shape_cast %217 : vector<1x8x128xf32> to vector<8x128xf32>
    %219 = vector.shape_cast %216 : vector<8x128xf32> to vector<1x8x128xf32>
    tpu.vector_store %arg5[%c0_57, %c0_58, %c0_59], %219 {strides = array<i32>} : memref<1x8x128xf32, #tpu.memory_space<vmem>>, vector<1x8x128xf32>,
    return
  }
  func.func @transform_0(%arg0: i32, %arg1: memref<1x8xi32, #tpu.memory_space<smem>>) -> (i32, i32) {
    %c0_i32 = arith.constant 0 : i32
    %c0_i32_0 = arith.constant 0 : i32
    %c0_i32_1 = arith.constant 0 : i32
    return %c0_i32, %c0_i32_0 : i32, i32
  }
  func.func @transform_1(%arg0: i32, %arg1: memref<1x8xi32, #tpu.memory_space<smem>>) -> (i32, i32, i32) {
    %c0_i32 = arith.constant 0 : i32
    %c0_i32_0 = arith.constant 0 : i32
    %c0_i32_1 = arith.constant 0 : i32
    %c0_i32_2 = arith.constant 0 : i32
    return %c0_i32, %c0_i32_0, %c0_i32_1 : i32, i32, i32
  }
  func.func @transform_2(%arg0: i32, %arg1: memref<1x8xi32, #tpu.memory_space<smem>>) -> (i32, i32) {
    %c0_i32 = arith.constant 0 : i32
    %c0_i32_0 = arith.constant 0 : i32
    %c0_i32_1 = arith.constant 0 : i32
    return %c0_i32, %c0_i32_0 : i32, i32
  }
  func.func @transform_3(%arg0: i32, %arg1: memref<1x8xi32, #tpu.memory_space<smem>>) -> (i32, i32, i32) {
    %c0_i32 = arith.constant 0 : i32
    %c0_i32_0 = arith.constant 0 : i32
    %c0_i32_1 = arith.constant 0 : i32
    return %arg0, %c0_i32, %c0_i32_0 : i32, i32, i32
  }
  func.func @transform_4(%arg0: i32, %arg1: memref<1x8xi32, #tpu.memory_space<smem>>) -> (i32, i32) {
    %c0_i32 = arith.constant 0 : i32
    %c0_i32_0 = arith.constant 0 : i32
    %c0_i32_1 = arith.constant 0 : i32
    return %c0_i32, %c0_i32_0 : i32, i32
  }
}

</mosaic_0001>

<llo_original>
// kernel: tpu_custom_call.1
$region0: #{tpu_custom_call.1}
  #allocation0 [shape = 'u32[]', space=smem, size = 0x4, offset = 0x4, fixed_abs, tag = 'smem constant byte address 0x4 - core index']
  #allocation1 [shape = 'u32[144,128]{1,0:T(1,128)}', space=vmem, size = 0x12000, scoped, tag = 'internal scratch']
  #allocation2 [shape = 's32[1]{0}', space=sflag, size = 0x4, scoped, tag = 'scoped memory for tpu_custom_call.1']
  #allocation3 [shape = 'u8[512]{0}', space=smem, size = 0x200, scoped, tag = 'prefetched SMEM operand 0']
  %s0 = inlined_call_operand.hbm [shape: s32[1,8], index: 0, kind: input, shape index: {}]
  %s1 = inlined_call_operand.hbm [shape: f32[8,32], index: 1, kind: input, shape index: {}]
  %s2 = inlined_call_operand.hbm [shape: f32[8,8,32], index: 2, kind: input, shape index: {}]
  %s3 = inlined_call_operand.hbm [shape: f32[232,128], index: 3, kind: input, shape index: {}]
  %s4 = inlined_call_operand.hbm [shape: f32[1,8,128], index: 4, kind: output, shape index: {0}]
  %s5 = inlined_call_operand.hbm [shape: f32[8,32], index: 5, kind: output, shape index: {1}]
  %6 = xla_tuple %s4, %s5
  %s7 = sld [smem:[#allocation0]]
  $region46: #{tpu_custom_call.1} parent=0
    _
  %s9 = ssub.s32 1, %s7
  %s10 = scalar_select 0, %s9, %s7
  %12 = dma.hbm_to_smem %s0, 16, [#allocation3], [#allocation2]
  %13 = dma.done [#allocation2], 16
  %14 = sfence
  $region1: #{tpu_custom_call.1} parent=0
    #allocation4 [shape = 'u8[4096]{0}', space=vmem, size = 0x1000, scoped, tag = 'input window, operand 1, single buffered']
    #allocation5 [shape = 's32[1]{0}', space=sflag, size = 0x4, scoped, tag = 'scoped memory for tpu_custom_call.1']
    #allocation6 [shape = 's32[1]{0}', space=sflag, size = 0x4, scoped, tag = 'scoped memory for tpu_custom_call.1']
    #allocation7 [shape = 'u8[32768]{0}', space=vmem, size = 0x8000, scoped, tag = 'input window, operand 2, single buffered']
    #allocation8 [shape = 's32[1]{0}', space=sflag, size = 0x4, scoped, tag = 'scoped memory for tpu_custom_call.1']
    #allocation9 [shape = 'u8[118784]{0}', space=vmem, size = 0x1d000, scoped, tag = 'input window, operand 3, single buffered']
    #allocation10 [shape = 'u8[4096]{0}', space=vmem, size = 0x1000, scoped, tag = 'output window, operand 0, single buffered']
    #allocation11 [shape = 'u8[4096]{0}', space=vmem, size = 0x1000, scoped, tag = 'output window, operand 1, single buffered']
    #allocation12 [shape = 's32[1]{0}', space=sflag, size = 0x4, scoped, tag = 'scoped memory for tpu_custom_call.1']
    %15 = vsyncpa [#allocation5], 0
    %16 = vsyncpa [#allocation8], 0
    %17 = vsyncpa [#allocation6], 0
    %18 = vsyncpa [#allocation12], 0
    // Predicated region
    $region2: #{tpu_custom_call.1} parent=1 // pred_check
      _
    $region3: #{tpu_custom_call.1} parent=1 // pred_check_branch
      %20 = sbr.rel (0) target = $region5
    $region4: #{tpu_custom_call.1} parent=1 // pred_region
      %s22 = ssub.s32 128, 128
      %23 = vsyncadd [#allocation5], %s22
      %s25 = sshll.u32 [#allocation4], 4
      %s26 = int_to_ptr.vmem [resolvable:$true] %s25
      %28 = dma.hbm_to_vmem [thread:$0]  %s1, 128, %s26, [#allocation5]
    $region5: #{tpu_custom_call.1} parent=1 // pred_fallthru
      _
    // Predicated region
    $region6: #{tpu_custom_call.1} parent=1 // pred_check
      _
    $region7: #{tpu_custom_call.1} parent=1 // pred_check_branch
      %30 = sbr.rel (0) target = $region9
    $region8: #{tpu_custom_call.1} parent=1 // pred_region
      %s32 = ssub.s32 1024, 1024
      %33 = vsyncadd [#allocation8], %s32
      %s34 = sshll.u32 [#allocation7], 4
      %s35 = int_to_ptr.vmem [resolvable:$true] %s34
      %40 = dma.hbm_to_vmem [thread:$0]  %s2, 1024, %s35, [#allocation8], 128, 128, 8
    $region9: #{tpu_custom_call.1} parent=1 // pred_fallthru
      _
    // Predicated region
    $region10: #{tpu_custom_call.1} parent=1 // pred_check
      _
    $region11: #{tpu_custom_call.1} parent=1 // pred_check_branch
      %42 = sbr.rel (0) target = $region13
    $region12: #{tpu_custom_call.1} parent=1 // pred_region
      %s44 = ssub.s32 3712, 3712
      %45 = vsyncadd [#allocation8], %s44
      %s46 = sshll.u32 [#allocation9], 4
      %s47 = int_to_ptr.vmem [resolvable:$true] %s46
      %52 = dma.hbm_to_vmem [thread:$0]  %s3, 3712, %s47, [#allocation8], 128, 128, 8
    $region13: #{tpu_custom_call.1} parent=1 // pred_fallthru
      _
    // Predicated region
    $region14: #{tpu_custom_call.1} parent=1 // pred_check
      _
    $region15: #{tpu_custom_call.1} parent=1 // pred_check_branch
      %54 = sbr.rel (0) target = $region17
    $region16: #{tpu_custom_call.1} parent=1 // pred_region
      %55 = dma.done [#allocation5], 128
    $region17: #{tpu_custom_call.1} parent=1 // pred_fallthru
      _
    // Predicated region
    $region18: #{tpu_custom_call.1} parent=1 // pred_check
      _
    $region19: #{tpu_custom_call.1} parent=1 // pred_check_branch
      %57 = sbr.rel (0) target = $region21
    $region20: #{tpu_custom_call.1} parent=1 // pred_region
      %58 = dma.done [#allocation8], 1024
    $region21: #{tpu_custom_call.1} parent=1 // pred_fallthru
      _
    // Predicated region
    $region22: #{tpu_custom_call.1} parent=1 // pred_check
      _
    $region23: #{tpu_custom_call.1} parent=1 // pred_check_branch
      %60 = sbr.rel (0) target = $region25
    $region24: #{tpu_custom_call.1} parent=1 // pred_region
      %61 = dma.done [#allocation8], 3712
    $region25: #{tpu_custom_call.1} parent=1 // pred_fallthru
      _
    %p62 = scmp.eq.s32.totalorder 0, 0
    // Predicated region
    $region26: #{tpu_custom_call.1} parent=1 // pred_check
      %p63 = pneg %p62
    $region27: #{tpu_custom_call.1} parent=1 // pred_check_branch
      %65 = sbr.rel (%p63) target = $region29
    $region28: #{tpu_custom_call.1} parent=1 // pred_region
      %v66 = vld [vmem:[#allocation4] sm:$0xff]
      %vm67 = vcmask 261120
      %68 = vst.msk [vmem:[#allocation11] sm:$0xff] %vm67, %v66
    $region29: #{tpu_custom_call.1} parent=1 // pred_fallthru
      _
    %v69 = vld [vmem:[#allocation11] sm:$0xff]
    %v70 = vld [vmem:[#allocation7] sm:$0xff]
    %v71 = vld [vmem:[#allocation7 + $0x8] sm:$0xff]
    %v72 = vld [vmem:[#allocation7 + $0x10] sm:$0xff]
    %v73 = vld [vmem:[#allocation7 + $0x18] sm:$0xff]
    %v74 = vld [vmem:[#allocation7 + $0x20] sm:$0xff]
    %v75 = vld [vmem:[#allocation7 + $0x28] sm:$0xff]
    %v76 = vld [vmem:[#allocation7 + $0x30] sm:$0xff]
    %v77 = vld [vmem:[#allocation7 + $0x38] sm:$0xff]
    %v78 = vld [vmem:[#allocation9 + $0xe0] sm:$0xff]
    %v79 = vld [vmem:[#allocation9] sm:$0xff]
    %v80 = vld [vmem:[#allocation9 + $0x8] sm:$0xff]
    %v81 = vld [vmem:[#allocation9 + $0x10] sm:$0xff]
    %v82 = vld [vmem:[#allocation9 + $0x18] sm:$0xff]
    %v83 = vadd.f32 %v69, %v70
    %v84 = vadd.f32 %v69, %v71
    %v85 = vadd.f32 %v69, %v72
    %v86 = vadd.f32 %v69, %v73
    %v87 = vadd.f32 %v69, %v74
    %v88 = vadd.f32 %v69, %v75
    %v89 = vadd.f32 %v69, %v76
    %v90 = vadd.f32 %v69, %v77
    %v91 = vlaneseq
    %v92 = vshrl.u32 %v91, 7
    %v93 = vsub.s32 0, %v92
    %v94 = vrot.slane %v78, %v93
    %vm95 = vcmask 261120
    %v97 = vsel %vm95, %v83, 0
    %v100 = vsel %vm95, %v84, 0
    %v103 = vsel %vm95, %v85, 0
    %v106 = vsel %vm95, %v86, 0
    %v109 = vsel %vm95, %v87, 0
    %v112 = vsel %vm95, %v88, 0
    %v115 = vsel %vm95, %v89, 0
    %v118 = vsel %vm95, %v90, 0
    %120 = vmatprep.subr.mxu0 0.0
    %121 = vmatpush1.msra.mxu0 %v79
    %122 = vmatprep.subr.mxu0 0.0
    %123 = vmatpush1.msra.mxu0 %v80
    %124 = vmatprep.subr.mxu0 0.0
    %125 = vmatpush1.msra.mxu0 %v81
    %126 = vmatprep.subr.mxu0 0.0
    %127 = vmatpush1.msra.mxu0 %v82
    %128 = vmatprep.subr.mxu0 0.0
    %129 = vmatpush1.msra.mxu0 0.0
    %130 = vmatprep.subr.mxu0 0.0
    %131 = vmatpush1.msra.mxu0 0.0
    %132 = vmatprep.subr.mxu0 0.0
    %133 = vmatpush1.msra.mxu0 0.0
    %134 = vmatprep.subr.mxu0 0.0
    %135 = vmatpush1.msra.mxu0 0.0
    %136 = vmatprep.subr.mxu0 0.0
    %137 = vmatpush1.msra.mxu0 0.0
    %138 = vmatprep.subr.mxu0 0.0
    %139 = vmatpush1.msra.mxu0 0.0
    %140 = vmatprep.subr.mxu0 0.0
    %141 = vmatpush1.msra.mxu0 0.0
    %142 = vmatprep.subr.mxu0 0.0
    %143 = vmatpush1.msra.mxu0 0.0
    %144 = vmatprep.subr.mxu0 0.0
    %145 = vmatpush1.msra.mxu0 0.0
    %146 = vmatprep.subr.mxu0 0.0
    %147 = vmatpush1.msra.mxu0 0.0
    %148 = vmatprep.subr.mxu0 0.0
    %149 = vmatpush1.msra.mxu0 0.0
    %150 = vmatprep.subr.mxu0 0.0
    %151 = vmatpush1.msra.mxu0 0.0
    %152 = vmatprep.subr.mxu0 0.0
    %153 = vmatpush1.msra.mxu0 0.0
    %154 = vmatprep.subr.mxu0 0.0
    %155 = vmatpush1.msra.mxu0 0.0
    %156 = vmatprep.subr.mxu0 0.0
    %157 = vmatpush1.msra.mxu0 0.0
    %158 = vmatprep.subr.mxu0 0.0
    %159 = vmatpush1.msra.mxu0 0.0
    %160 = vmatprep.subr.mxu0 0.0
    %161 = vmatpush1.msra.mxu0 0.0
    %162 = vmatprep.subr.mxu0 0.0
    %163 = vmatpush1.msra.mxu0 0.0
    %164 = vmatprep.subr.mxu0 0.0
    %165 = vmatpush1.msra.mxu0 0.0
    %166 = vmatprep.subr.mxu0 0.0
    %167 = vmatpush1.msra.mxu0 0.0
    %168 = vmatprep.subr.mxu0 0.0
    %169 = vmatpush1.msra.mxu0 0.0
    %170 = vmatprep.subr.mxu0 0.0
    %171 = vmatpush1.msra.mxu0 0.0
    %172 = vmatprep.subr.mxu0 0.0
    %173 = vmatpush1.msra.mxu0 0.0
    %174 = vmatprep.subr.mxu0 0.0
    %175 = vmatpush1.msra.mxu0 0.0
    %176 = vmatprep.subr.mxu0 0.0
    %177 = vmatpush1.msra.mxu0 0.0
    %178 = vmatprep.subr.mxu0 0.0
    %179 = vmatpush1.msra.mxu0 0.0
    %180 = vmatprep.subr.mxu0 0.0
    %181 = vmatpush1.msra.mxu0 0.0
    %182 = vmatprep.subr.mxu0 0.0
    %183 = vmatpush1.msra.mxu0 0.0
    %184 = vmatprep.mubr.f32.mxu0 0.0
    %185 = vmatmul.mubr.f32.gmra.mrb[0].mxu0 %v97
    %v186 = vpop.f32.mrb[0].mxu0
    %v187 = vadd.f32 %v94, %v186
    %v188 = vpop.f32.mrb[0].mxu0
    %189 = vmatprep.mubr.f32.mxu0 0.0
    %190 = vmatmul.mubr.f32.gmra.mrb[0].mxu0 %v100
    %v191 = vpop.f32.mrb[0].mxu0
    %v192 = vadd.f32 %v94, %v191
    %v193 = vpop.f32.mrb[0].mxu0
    %194 = vmatprep.mubr.f32.mxu0 0.0
    %195 = vmatmul.mubr.f32.gmra.mrb[0].mxu0 %v103
    %v196 = vpop.f32.mrb[0].mxu0
    %v197 = vadd.f32 %v94, %v196
    %v198 = vpop.f32.mrb[0].mxu0
    %199 = vmatprep.mubr.f32.mxu0 0.0
    %200 = vmatmul.mubr.f32.gmra.mrb[0].mxu0 %v106
    %v201 = vpop.f32.mrb[0].mxu0
    %v202 = vadd.f32 %v94, %v201
    %v203 = vpop.f32.mrb[0].mxu0
    %204 = vmatprep.mubr.f32.mxu0 0.0
    %205 = vmatmul.mubr.f32.gmra.mrb[0].mxu0 %v109
    %v206 = vpop.f32.mrb[0].mxu0
    %v207 = vadd.f32 %v94, %v206
    %v208 = vpop.f32.mrb[0].mxu0
    %209 = vmatprep.mubr.f32.mxu0 0.0
    %210 = vmatmul.mubr.f32.gmra.mrb[0].mxu0 %v112
    %v211 = vpop.f32.mrb[0].mxu0
    %v212 = vadd.f32 %v94, %v211
    %v213 = vpop.f32.mrb[0].mxu0
    %214 = vmatprep.mubr.f32.mxu0 0.0
    %215 = vmatmul.mubr.f32.gmra.mrb[0].mxu0 %v115
    %v216 = vpop.f32.mrb[0].mxu0
    %v217 = vadd.f32 %v94, %v216
    %v218 = vpop.f32.mrb[0].mxu0
    %219 = vmatprep.mubr.f32.mxu0 0.0
    %220 = vmatmul.mubr.f32.gmra.mrb[0].mxu0 %v118
    %v221 = vpop.f32.mrb[0].mxu0
    %v222 = vadd.f32 %v94, %v221
    %v223 = vpop.f32.mrb[0].mxu0
    %224 = vdwg.mxu0
    %v225 = vtanh.pop %v187
    %v226 = vtanh.pop %v192
    %v227 = vtanh.pop %v197
    %v228 = vtanh.pop %v202
    %v229 = vtanh.pop %v207
    %v230 = vtanh.pop %v212
    %v231 = vtanh.pop %v217
    %v232 = vtanh.pop %v222
    %233 = vadd.xlane.f32.xlu0 %v225
    %v234 = vpop.xlane.xlu0 %233
    %235 = vadd.xlane.f32.xlu0 %v226
    %v236 = vpop.xlane.xlu0 %235
    %237 = vadd.xlane.f32.xlu0 %v227
    %v238 = vpop.xlane.xlu0 %237
    %239 = vadd.xlane.f32.xlu0 %v228
    %v240 = vpop.xlane.xlu0 %239
    %241 = vadd.xlane.f32.xlu0 %v229
    %v242 = vpop.xlane.xlu0 %241
    %243 = vadd.xlane.f32.xlu0 %v230
    %v244 = vpop.xlane.xlu0 %243
    %245 = vadd.xlane.f32.xlu0 %v231
    %v246 = vpop.xlane.xlu0 %245
    %247 = vadd.xlane.f32.xlu0 %v232
    %v248 = vpop.xlane.xlu0 %247
    %v249 = vlaneseq
    %v250 = vand.u32 %v249, 127
    %vm251 = vcmp.eq.s32.totalorder %v250, 0
    %v252 = vsel %vm251, %v234, 0.0
    %v253 = vadd.f32 %v252, 0.0
    %vm254 = vcmp.eq.s32.totalorder %v250, 1
    %v255 = vsel %vm254, %v236, 0.0
    %v256 = vadd.f32 %v253, %v255
    %vm257 = vcmp.eq.s32.totalorder %v250, 2
    %v258 = vsel %vm257, %v238, 0.0
    %v259 = vadd.f32 %v256, %v258
    %vm260 = vcmp.eq.s32.totalorder %v250, 3
    %v261 = vsel %vm260, %v240, 0.0
    %v262 = vadd.f32 %v259, %v261
    %vm263 = vcmp.eq.s32.totalorder %v250, 4
    %v264 = vsel %vm263, %v242, 0.0
    %v265 = vadd.f32 %v262, %v264
    %vm266 = vcmp.eq.s32.totalorder %v250, 5
    %v267 = vsel %vm266, %v244, 0.0
    %v268 = vadd.f32 %v265, %v267
    %vm269 = vcmp.eq.s32.totalorder %v250, 6
    %v270 = vsel %vm269, %v246, 0.0
    %v271 = vadd.f32 %v268, %v270
    %vm272 = vcmp.eq.s32.totalorder %v250, 7
    %v273 = vsel %vm272, %v248, 0.0
    %v274 = vadd.f32 %v271, %v273
    %vm275 = vcmask 64512
    %v276 = vsel %vm275, %v274, -inf
    %v277 = vrot.slane %v276, 4
    %v278 = vmax.f32 %v276, %v277
    %v279 = vrot.slane %v278, 2
    %v280 = vmax.f32 %v278, %v279
    %v281 = vrot.slane %v280, 1
    %v282 = vmax.f32 %v280, %v281
    %v283 = vsub.f32 %v274, %v282
    %v284 = vmul.f32 %v283, 1.442695
    %v285 = vpow.pop %v284
    %v286 = vsel %vm275, %v285, 0.0
    %v287 = vrot.slane %v286, 4
    %v288 = vadd.f32 %v286, %v287
    %v289 = vrot.slane %v288, 2
    %v290 = vadd.f32 %v288, %v289
    %v291 = vrot.slane %v290, 1
    %v292 = vadd.f32 %v290, %v291
    %v293 = vrcp.pop %v292
    %v294 = vmul.f32 %v285, %v293
    %v295 = vlaneseq
    %v296 = vshrl.u32 %v295, 7
    %v297 = vsub.s32 0, %v296
    %v298 = vrot.slane %v294, %v297
    %300 = vbcast.lane.b32.xlu0 %v298, 256
    %v301 = vpop.permute.xlu0 %300
    %v302 = vlaneseq
    %v303 = vshrl.u32 %v302, 7
    %v304 = vsub.s32 1, %v303
    %v305 = vrot.slane %v294, %v304
    %307 = vbcast.lane.b32.xlu0 %v305, 256
    %v308 = vpop.permute.xlu0 %307
    %v309 = vlaneseq
    %v310 = vshrl.u32 %v309, 7
    %v311 = vsub.s32 2, %v310
    %v312 = vrot.slane %v294, %v311
    %314 = vbcast.lane.b32.xlu0 %v312, 256
    %v315 = vpop.permute.xlu0 %314
    %v316 = vlaneseq
    %v317 = vshrl.u32 %v316, 7
    %v318 = vsub.s32 3, %v317
    %v319 = vrot.slane %v294, %v318
    %321 = vbcast.lane.b32.xlu0 %v319, 256
    %v322 = vpop.permute.xlu0 %321
    %v323 = vlaneseq
    %v324 = vshrl.u32 %v323, 7
    %v325 = vsub.s32 4, %v324
    %v326 = vrot.slane %v294, %v325
    %328 = vbcast.lane.b32.xlu0 %v326, 256
    %v329 = vpop.permute.xlu0 %328
    %v330 = vlaneseq
    %v331 = vshrl.u32 %v330, 7
    %v332 = vsub.s32 5, %v331
    %v333 = vrot.slane %v294, %v332
    %335 = vbcast.lane.b32.xlu0 %v333, 256
    %v336 = vpop.permute.xlu0 %335
    %v337 = vlaneseq
    %v338 = vshrl.u32 %v337, 7
    %v339 = vsub.s32 6, %v338
    %v340 = vrot.slane %v294, %v339
    %342 = vbcast.lane.b32.xlu0 %v340, 256
    %v343 = vpop.permute.xlu0 %342
    %v344 = vlaneseq
    %v345 = vshrl.u32 %v344, 7
    %v346 = vsub.s32 7, %v345
    %v347 = vrot.slane %v294, %v346
    %349 = vbcast.lane.b32.xlu0 %v347, 256
    %v350 = vpop.permute.xlu0 %349
    %v351 = vmul.f32 %v301, %v70
    %v352 = vmul.f32 %v308, %v71
    %v353 = vmul.f32 %v315, %v72
    %v354 = vmul.f32 %v322, %v73
    %v355 = vmul.f32 %v329, %v74
    %v356 = vmul.f32 %v336, %v75
    %v357 = vmul.f32 %v343, %v76
    %v358 = vmul.f32 %v350, %v77
    %v359 = vsel %vm95, %v351, 0.0
    %v360 = vsel %vm95, %v352, 0.0
    %v361 = vadd.f32 %v359, %v360
    %v362 = vsel %vm95, %v353, 0.0
    %v363 = vadd.f32 %v361, %v362
    %v364 = vsel %vm95, %v354, 0.0
    %v365 = vadd.f32 %v363, %v364
    %v366 = vsel %vm95, %v355, 0.0
    %v367 = vadd.f32 %v365, %v366
    %v368 = vsel %vm95, %v356, 0.0
    %v369 = vadd.f32 %v367, %v368
    %v370 = vsel %vm95, %v357, 0.0
    %v371 = vadd.f32 %v369, %v370
    %v372 = vsel %vm95, %v358, 0.0
    %v373 = vadd.f32 %v371, %v372
    %v374 = vlaneseq
    %v375 = vshrl.u32 %v374, 7
    %vm376 = vcmp.eq.s32.totalorder %v375, 0
    %s377 = smul.u32 0, 128
    %s378 = sld [smem:[#allocation3 + %s377]]
    %v379 = vstv %s378
    %v380 = vsel %vm376, %v379, 0
    %vm381 = vcmp.eq.s32.totalorder %v375, 1
    %s382 = sadd.s32 %s377, 1
    %s383 = sld [smem:[#allocation3 + %s382]]
    %v384 = vstv %s383
    %v385 = vsel %vm381, %v384, 0
    %v386 = vadd.s32 %v380, %v385
    %vm387 = vcmp.eq.s32.totalorder %v375, 2
    %s388 = sadd.s32 %s377, 2
    %s389 = sld [smem:[#allocation3 + %s388]]
    %v390 = vstv %s389
    %v391 = vsel %vm387, %v390, 0
    %v392 = vadd.s32 %v386, %v391
    %vm393 = vcmp.eq.s32.totalorder %v375, 3
    %s394 = sadd.s32 %s377, 3
    %s395 = sld [smem:[#allocation3 + %s394]]
    %v396 = vstv %s395
    %v397 = vsel %vm393, %v396, 0
    %v398 = vadd.s32 %v392, %v397
    %vm399 = vcmp.eq.s32.totalorder %v375, 4
    %s400 = sadd.s32 %s377, 4
    %s401 = sld [smem:[#allocation3 + %s400]]
    %v402 = vstv %s401
    %v403 = vsel %vm399, %v402, 0
    %v404 = vadd.s32 %v398, %v403
    %vm405 = vcmp.eq.s32.totalorder %v375, 5
    %s406 = sadd.s32 %s377, 5
    %s407 = sld [smem:[#allocation3 + %s406]]
    %v408 = vstv %s407
    %v409 = vsel %vm405, %v408, 0
    %v410 = vadd.s32 %v404, %v409
    %vm411 = vcmp.eq.s32.totalorder %v375, 6
    %s412 = sadd.s32 %s377, 6
    %s413 = sld [smem:[#allocation3 + %s412]]
    %v414 = vstv %s413
    %v415 = vsel %vm411, %v414, 0
    %v416 = vadd.s32 %v410, %v415
    %vm417 = vcmp.eq.s32.totalorder %v375, 7
    %s418 = sadd.s32 %s377, 7
    %s419 = sld [smem:[#allocation3 + %s418]]
    %v420 = vstv %s419
    %v421 = vsel %vm417, %v420, 0
    %v422 = vadd.s32 %v416, %v421
    %vm423 = vcmp.eq.s32.totalorder %v250, %v422
    %v424 = vsel %vm423, 1.0, 0.0
    %v425 = vld [vmem:[#allocation9 + $0x20] sm:$0xff]
    %v426 = vld [vmem:[#allocation9 + $0x28] sm:$0xff]
    %v427 = vld [vmem:[#allocation9 + $0x30] sm:$0xff]
    %v428 = vld [vmem:[#allocation9 + $0x38] sm:$0xff]
    %v429 = vld [vmem:[#allocation9 + $0x40] sm:$0xff]
    %v430 = vld [vmem:[#allocation9 + $0x48] sm:$0xff]
    %v431 = vld [vmem:[#allocation9 + $0x50] sm:$0xff]
    %v432 = vld [vmem:[#allocation9 + $0x58] sm:$0xff]
    %v433 = vld [vmem:[#allocation9 + $0x60] sm:$0xff]
    %v434 = vld [vmem:[#allocation9 + $0x68] sm:$0xff]
    %v435 = vld [vmem:[#allocation9 + $0x70] sm:$0xff]
    %v436 = vld [vmem:[#allocation9 + $0x78] sm:$0xff]
    %v437 = vld [vmem:[#allocation9 + $0x80] sm:$0xff]
    %v438 = vld [vmem:[#allocation9 + $0x88] sm:$0xff]
    %v439 = vld [vmem:[#allocation9 + $0x90] sm:$0xff]
    %v440 = vld [vmem:[#allocation9 + $0x98] sm:$0xff]
    %v442 = vsel %vm95, %v373, 0
    %444 = vmatprep.subr.mxu0 0.0
    %445 = vmatpush1.msra.mxu0 %v433
    %446 = vmatprep.subr.mxu0 0.0
    %447 = vmatpush1.msra.mxu0 %v434
    %448 = vmatprep.subr.mxu0 0.0
    %449 = vmatpush1.msra.mxu0 %v435
    %450 = vmatprep.subr.mxu0 0.0
    %451 = vmatpush1.msra.mxu0 %v436
    %452 = vmatprep.subr.mxu0 0.0
    %453 = vmatpush1.msra.mxu0 0.0
    %454 = vmatprep.subr.mxu0 0.0
    %455 = vmatpush1.msra.mxu0 0.0
    %456 = vmatprep.subr.mxu0 0.0
    %457 = vmatpush1.msra.mxu0 0.0
    %458 = vmatprep.subr.mxu0 0.0
    %459 = vmatpush1.msra.mxu0 0.0
    %460 = vmatprep.subr.mxu0 0.0
    %461 = vmatpush1.msra.mxu0 0.0
    %462 = vmatprep.subr.mxu0 0.0
    %463 = vmatpush1.msra.mxu0 0.0
    %464 = vmatprep.subr.mxu0 0.0
    %465 = vmatpush1.msra.mxu0 0.0
    %466 = vmatprep.subr.mxu0 0.0
    %467 = vmatpush1.msra.mxu0 0.0
    %468 = vmatprep.subr.mxu0 0.0
    %469 = vmatpush1.msra.mxu0 0.0
    %470 = vmatprep.subr.mxu0 0.0
    %471 = vmatpush1.msra.mxu0 0.0
    %472 = vmatprep.subr.mxu0 0.0
    %473 = vmatpush1.msra.mxu0 0.0
    %474 = vmatprep.subr.mxu0 0.0
    %475 = vmatpush1.msra.mxu0 0.0
    %476 = vmatprep.subr.mxu0 0.0
    %477 = vmatpush1.msra.mxu0 0.0
    %478 = vmatprep.subr.mxu0 0.0
    %479 = vmatpush1.msra.mxu0 0.0
    %480 = vmatprep.subr.mxu0 0.0
    %481 = vmatpush1.msra.mxu0 0.0
    %482 = vmatprep.subr.mxu0 0.0
    %483 = vmatpush1.msra.mxu0 0.0
    %484 = vmatprep.subr.mxu0 0.0
    %485 = vmatpush1.msra.mxu0 0.0
    %486 = vmatprep.subr.mxu0 0.0
    %487 = vmatpush1.msra.mxu0 0.0
    %488 = vmatprep.subr.mxu0 0.0
    %489 = vmatpush1.msra.mxu0 0.0
    %490 = vmatprep.subr.mxu0 0.0
    %491 = vmatpush1.msra.mxu0 0.0
    %492 = vmatprep.subr.mxu0 0.0
    %493 = vmatpush1.msra.mxu0 0.0
    %494 = vmatprep.subr.mxu0 0.0
    %495 = vmatpush1.msra.mxu0 0.0
    %496 = vmatprep.subr.mxu0 0.0
    %497 = vmatpush1.msra.mxu0 0.0
    %498 = vmatprep.subr.mxu0 0.0
    %499 = vmatpush1.msra.mxu0 0.0
    %500 = vmatprep.subr.mxu0 0.0
    %501 = vmatpush1.msra.mxu0 0.0
    %502 = vmatprep.subr.mxu0 0.0
    %503 = vmatpush1.msra.mxu0 0.0
    %504 = vmatprep.subr.mxu0 0.0
    %505 = vmatpush1.msra.mxu0 0.0
    %506 = vmatprep.subr.mxu0 0.0
    %507 = vmatpush1.msra.mxu0 0.0
    %508 = vmatprep.mubr.f32.mxu0 0.0
    %509 = vmatmul.mubr.f32.gmra.mrb[0].mxu0 %v442
    %v510 = vpop.f32.mrb[0].mxu0
    %v511 = vadd.f32 0.0, %v510
    %v512 = vpop.f32.mrb[0].mxu0
    %513 = vdwg.mxu0
    %vm514 = vcmask 523264
    %v516 = vsel %vm514, %v424, 0
    %518 = vmatprep.subr.mxu0 0.0
    %519 = vmatpush1.msra.mxu0 %v425
    %520 = vmatprep.subr.mxu0 0.0
    %521 = vmatpush1.msra.mxu0 %v426
    %522 = vmatprep.subr.mxu0 0.0
    %523 = vmatpush1.msra.mxu0 %v427
    %524 = vmatprep.subr.mxu0 0.0
    %525 = vmatpush1.msra.mxu0 %v428
    %526 = vmatprep.subr.mxu0 0.0
    %527 = vmatpush1.msra.mxu0 %v429
    %528 = vmatprep.subr.mxu0 0.0
    %529 = vmatpush1.msra.mxu0 %v430
    %530 = vmatprep.subr.mxu0 0.0
    %531 = vmatpush1.msra.mxu0 %v431
    %532 = vmatprep.subr.mxu0 0.0
    %533 = vmatpush1.msra.mxu0 %v432
    %534 = vmatprep.subr.mxu0 0.0
    %535 = vmatpush1.msra.mxu0 0.0
    %536 = vmatprep.subr.mxu0 0.0
    %537 = vmatpush1.msra.mxu0 0.0
    %538 = vmatprep.subr.mxu0 0.0
    %539 = vmatpush1.msra.mxu0 0.0
    %540 = vmatprep.subr.mxu0 0.0
    %541 = vmatpush1.msra.mxu0 0.0
    %542 = vmatprep.subr.mxu0 0.0
    %543 = vmatpush1.msra.mxu0 0.0
    %544 = vmatprep.subr.mxu0 0.0
    %545 = vmatpush1.msra.mxu0 0.0
    %546 = vmatprep.subr.mxu0 0.0
    %547 = vmatpush1.msra.mxu0 0.0
    %548 = vmatprep.subr.mxu0 0.0
    %549 = vmatpush1.msra.mxu0 0.0
    %550 = vmatprep.subr.mxu0 0.0
    %551 = vmatpush1.msra.mxu0 0.0
    %552 = vmatprep.subr.mxu0 0.0
    %553 = vmatpush1.msra.mxu0 0.0
    %554 = vmatprep.subr.mxu0 0.0
    %555 = vmatpush1.msra.mxu0 0.0
    %556 = vmatprep.subr.mxu0 0.0
    %557 = vmatpush1.msra.mxu0 0.0
    %558 = vmatprep.subr.mxu0 0.0
    %559 = vmatpush1.msra.mxu0 0.0
    %560 = vmatprep.subr.mxu0 0.0
    %561 = vmatpush1.msra.mxu0 0.0
    %562 = vmatprep.subr.mxu0 0.0
    %563 = vmatpush1.msra.mxu0 0.0
    %564 = vmatprep.subr.mxu0 0.0
    %565 = vmatpush1.msra.mxu0 0.0
    %566 = vmatprep.subr.mxu0 0.0
    %567 = vmatpush1.msra.mxu0 0.0
    %568 = vmatprep.subr.mxu0 0.0
    %569 = vmatpush1.msra.mxu0 0.0
    %570 = vmatprep.subr.mxu0 0.0
    %571 = vmatpush1.msra.mxu0 0.0
    %572 = vmatprep.subr.mxu0 0.0
    %573 = vmatpush1.msra.mxu0 0.0
    %574 = vmatprep.subr.mxu0 0.0
    %575 = vmatpush1.msra.mxu0 0.0
    %576 = vmatprep.subr.mxu0 0.0
    %577 = vmatpush1.msra.mxu0 0.0
    %578 = vmatprep.subr.mxu0 0.0
    %579 = vmatpush1.msra.mxu0 0.0
    %580 = vmatprep.subr.mxu0 0.0
    %581 = vmatpush1.msra.mxu0 0.0
    %582 = vmatprep.mubr.f32.mxu0 0.0
    %583 = vmatmul.mubr.f32.gmra.mrb[0].mxu0 %v516
    %v584 = vpop.f32.mrb[0].mxu0
    %v585 = vadd.f32 %v511, %v584
    %v586 = vpop.f32.mrb[0].mxu0
    %587 = vdwg.mxu0
    %v588 = vlaneseq
    %v589 = vshrl.u32 %v588, 7
    %v590 = vsub.s32 1, %v589
    %v591 = vrot.slane %v78, %v590
    %v592 = vadd.f32 %v585, %v591
    %v593 = vlaneseq
    %v594 = vshrl.u32 %v593, 7
    %v595 = vsub.s32 2, %v594
    %v596 = vrot.slane %v78, %v595
    %v598 = vsel %vm95, %v69, 0
    %600 = vmatprep.subr.mxu0 0.0
    %601 = vmatpush1.msra.mxu0 %v437
    %602 = vmatprep.subr.mxu0 0.0
    %603 = vmatpush1.msra.mxu0 %v438
    %604 = vmatprep.subr.mxu0 0.0
    %605 = vmatpush1.msra.mxu0 %v439
    %606 = vmatprep.subr.mxu0 0.0
    %607 = vmatpush1.msra.mxu0 %v440
    %608 = vmatprep.subr.mxu0 0.0
    %609 = vmatpush1.msra.mxu0 0.0
    %610 = vmatprep.subr.mxu0 0.0
    %611 = vmatpush1.msra.mxu0 0.0
    %612 = vmatprep.subr.mxu0 0.0
    %613 = vmatpush1.msra.mxu0 0.0
    %614 = vmatprep.subr.mxu0 0.0
    %615 = vmatpush1.msra.mxu0 0.0
    %616 = vmatprep.subr.mxu0 0.0
    %617 = vmatpush1.msra.mxu0 0.0
    %618 = vmatprep.subr.mxu0 0.0
    %619 = vmatpush1.msra.mxu0 0.0
    %620 = vmatprep.subr.mxu0 0.0
    %621 = vmatpush1.msra.mxu0 0.0
    %622 = vmatprep.subr.mxu0 0.0
    %623 = vmatpush1.msra.mxu0 0.0
    %624 = vmatprep.subr.mxu0 0.0
    %625 = vmatpush1.msra.mxu0 0.0
    %626 = vmatprep.subr.mxu0 0.0
    %627 = vmatpush1.msra.mxu0 0.0
    %628 = vmatprep.subr.mxu0 0.0
    %629 = vmatpush1.msra.mxu0 0.0
    %630 = vmatprep.subr.mxu0 0.0
    %631 = vmatpush1.msra.mxu0 0.0
    %632 = vmatprep.subr.mxu0 0.0
    %633 = vmatpush1.msra.mxu0 0.0
    %634 = vmatprep.subr.mxu0 0.0
    %635 = vmatpush1.msra.mxu0 0.0
    %636 = vmatprep.subr.mxu0 0.0
    %637 = vmatpush1.msra.mxu0 0.0
    %638 = vmatprep.subr.mxu0 0.0
    %639 = vmatpush1.msra.mxu0 0.0
    %640 = vmatprep.subr.mxu0 0.0
    %641 = vmatpush1.msra.mxu0 0.0
    %642 = vmatprep.subr.mxu0 0.0
    %643 = vmatpush1.msra.mxu0 0.0
    %644 = vmatprep.subr.mxu0 0.0
    %645 = vmatpush1.msra.mxu0 0.0
    %646 = vmatprep.subr.mxu0 0.0
    %647 = vmatpush1.msra.mxu0 0.0
    %648 = vmatprep.subr.mxu0 0.0
    %649 = vmatpush1.msra.mxu0 0.0
    %650 = vmatprep.subr.mxu0 0.0
    %651 = vmatpush1.msra.mxu0 0.0
    %652 = vmatprep.subr.mxu0 0.0
    %653 = vmatpush1.msra.mxu0 0.0
    %654 = vmatprep.subr.mxu0 0.0
    %655 = vmatpush1.msra.mxu0 0.0
    %656 = vmatprep.subr.mxu0 0.0
    %657 = vmatpush1.msra.mxu0 0.0
    %658 = vmatprep.subr.mxu0 0.0
    %659 = vmatpush1.msra.mxu0 0.0
    %660 = vmatprep.subr.mxu0 0.0
    %661 = vmatpush1.msra.mxu0 0.0
    %662 = vmatprep.subr.mxu0 0.0
    %663 = vmatpush1.msra.mxu0 0.0
    %664 = vmatprep.mubr.f32.mxu0 0.0
    %665 = vmatmul.mubr.f32.gmra.mrb[0].mxu0 %v598
    %v666 = vpop.f32.mrb[0].mxu0
    %v667 = vadd.f32 %v596, %v666
    %v668 = vpop.f32.mrb[0].mxu0
    %669 = vdwg.mxu0
    %v670 = vadd.f32 %v592, %v667
    %v671 = vxor.u32 %v670, 2147483648
    %v672 = vmul.f32 %v671, 1.442695
    %v673 = vpow.pop %v672
    %v674 = vadd.f32 %v673, 1.0
    %v675 = vrcp.pop %v674
    %v676 = vmul.f32 1.0, %v675
    %678 = vrot.lane.b32.xlu0 %v667, 64
    %v679 = vpop.permute.xlu0 %678
    %v681 = vmul.f32 %v676, %v679
    %683 = vrot.lane.b32.xlu0 %v681, 64
    %v684 = vpop.permute.xlu0 %683
    %v686 = vadd.f32 %v592, %v684
    %v687 = vtanh.pop %v686
    %v688 = vsub.f32 1.0, %v676
    %690 = vrot.lane.b32.xlu0 %v687, 96
    %v691 = vpop.permute.xlu0 %690
    %v693 = vmul.f32 %v688, %v691
    %694 = vrot.lane.b32.xlu0 %v69, 32
    %v695 = vpop.permute.xlu0 %694
    %v697 = vmul.f32 %v676, %v695
    %v698 = vadd.f32 %v693, %v697
    %700 = vrot.lane.b32.xlu0 %v698, 96
    %v701 = vpop.permute.xlu0 %700
    %703 = vst.msk [vmem:[#allocation11] sm:$0xff] %vm95, %v701
    %v704 = vld [vmem:[#allocation9 + $0xa0] sm:$0xff]
    %v705 = vld [vmem:[#allocation9 + $0xa8] sm:$0xff]
    %v706 = vld [vmem:[#allocation9 + $0xb0] sm:$0xff]
    %v707 = vld [vmem:[#allocation9 + $0xb8] sm:$0xff]
    %v708 = vld [vmem:[#allocation9 + $0xc0] sm:$0xff]
    %v709 = vld [vmem:[#allocation9 + $0xc8] sm:$0xff]
    %v710 = vld [vmem:[#allocation9 + $0xd0] sm:$0xff]
    %v711 = vld [vmem:[#allocation9 + $0xd8] sm:$0xff]
    %712 = vmatprep.subr.mxu0 0.0
    %713 = vmatpush1.msra.mxu0 %v708
    %714 = vmatprep.subr.mxu0 0.0
    %715 = vmatpush1.msra.mxu0 %v709
    %716 = vmatprep.subr.mxu0 0.0
    %717 = vmatpush1.msra.mxu0 %v710
    %718 = vmatprep.subr.mxu0 0.0
    %719 = vmatpush1.msra.mxu0 %v711
    %720 = vmatprep.subr.mxu0 0.0
    %721 = vmatpush1.msra.mxu0 0.0
    %722 = vmatprep.subr.mxu0 0.0
    %723 = vmatpush1.msra.mxu0 0.0
    %724 = vmatprep.subr.mxu0 0.0
    %725 = vmatpush1.msra.mxu0 0.0
    %726 = vmatprep.subr.mxu0 0.0
    %727 = vmatpush1.msra.mxu0 0.0
    %728 = vmatprep.subr.mxu0 0.0
    %729 = vmatpush1.msra.mxu0 0.0
    %730 = vmatprep.subr.mxu0 0.0
    %731 = vmatpush1.msra.mxu0 0.0
    %732 = vmatprep.subr.mxu0 0.0
    %733 = vmatpush1.msra.mxu0 0.0
    %734 = vmatprep.subr.mxu0 0.0
    %735 = vmatpush1.msra.mxu0 0.0
    %736 = vmatprep.subr.mxu0 0.0
    %737 = vmatpush1.msra.mxu0 0.0
    %738 = vmatprep.subr.mxu0 0.0
    %739 = vmatpush1.msra.mxu0 0.0
    %740 = vmatprep.subr.mxu0 0.0
    %741 = vmatpush1.msra.mxu0 0.0
    %742 = vmatprep.subr.mxu0 0.0
    %743 = vmatpush1.msra.mxu0 0.0
    %744 = vmatprep.subr.mxu0 0.0
    %745 = vmatpush1.msra.mxu0 0.0
    %746 = vmatprep.subr.mxu0 0.0
    %747 = vmatpush1.msra.mxu0 0.0
    %748 = vmatprep.subr.mxu0 0.0
    %749 = vmatpush1.msra.mxu0 0.0
    %750 = vmatprep.subr.mxu0 0.0
    %751 = vmatpush1.msra.mxu0 0.0
    %752 = vmatprep.subr.mxu0 0.0
    %753 = vmatpush1.msra.mxu0 0.0
    %754 = vmatprep.subr.mxu0 0.0
    %755 = vmatpush1.msra.mxu0 0.0
    %756 = vmatprep.subr.mxu0 0.0
    %757 = vmatpush1.msra.mxu0 0.0
    %758 = vmatprep.subr.mxu0 0.0
    %759 = vmatpush1.msra.mxu0 0.0
    %760 = vmatprep.subr.mxu0 0.0
    %761 = vmatpush1.msra.mxu0 0.0
    %762 = vmatprep.subr.mxu0 0.0
    %763 = vmatpush1.msra.mxu0 0.0
    %764 = vmatprep.subr.mxu0 0.0
    %765 = vmatpush1.msra.mxu0 0.0
    %766 = vmatprep.subr.mxu0 0.0
    %767 = vmatpush1.msra.mxu0 0.0
    %768 = vmatprep.subr.mxu0 0.0
    %769 = vmatpush1.msra.mxu0 0.0
    %770 = vmatprep.subr.mxu0 0.0
    %771 = vmatpush1.msra.mxu0 0.0
    %772 = vmatprep.subr.mxu0 0.0
    %773 = vmatpush1.msra.mxu0 0.0
    %774 = vmatprep.subr.mxu0 0.0
    %775 = vmatpush1.msra.mxu0 0.0
    %776 = vmatprep.mubr.f32.mxu0 0.0
    %777 = vmatmul.mubr.f32.gmra.mrb[0].mxu0 %v442
    %v778 = vpop.f32.mrb[0].mxu0
    %v779 = vadd.f32 0.0, %v778
    %v780 = vpop.f32.mrb[0].mxu0
    %781 = vdwg.mxu0
    %v782 = vsel %vm95, %v701, 0
    %784 = vmatprep.subr.mxu0 0.0
    %785 = vmatpush1.msra.mxu0 %v704
    %786 = vmatprep.subr.mxu0 0.0
    %787 = vmatpush1.msra.mxu0 %v705
    %788 = vmatprep.subr.mxu0 0.0
    %789 = vmatpush1.msra.mxu0 %v706
    %790 = vmatprep.subr.mxu0 0.0
    %791 = vmatpush1.msra.mxu0 %v707
    %792 = vmatprep.subr.mxu0 0.0
    %793 = vmatpush1.msra.mxu0 0.0
    %794 = vmatprep.subr.mxu0 0.0
    %795 = vmatpush1.msra.mxu0 0.0
    %796 = vmatprep.subr.mxu0 0.0
    %797 = vmatpush1.msra.mxu0 0.0
    %798 = vmatprep.subr.mxu0 0.0
    %799 = vmatpush1.msra.mxu0 0.0
    %800 = vmatprep.subr.mxu0 0.0
    %801 = vmatpush1.msra.mxu0 0.0
    %802 = vmatprep.subr.mxu0 0.0
    %803 = vmatpush1.msra.mxu0 0.0
    %804 = vmatprep.subr.mxu0 0.0
    %805 = vmatpush1.msra.mxu0 0.0
    %806 = vmatprep.subr.mxu0 0.0
    %807 = vmatpush1.msra.mxu0 0.0
    %808 = vmatprep.subr.mxu0 0.0
    %809 = vmatpush1.msra.mxu0 0.0
    %810 = vmatprep.subr.mxu0 0.0
    %811 = vmatpush1.msra.mxu0 0.0
    %812 = vmatprep.subr.mxu0 0.0
    %813 = vmatpush1.msra.mxu0 0.0
    %814 = vmatprep.subr.mxu0 0.0
    %815 = vmatpush1.msra.mxu0 0.0
    %816 = vmatprep.subr.mxu0 0.0
    %817 = vmatpush1.msra.mxu0 0.0
    %818 = vmatprep.subr.mxu0 0.0
    %819 = vmatpush1.msra.mxu0 0.0
    %820 = vmatprep.subr.mxu0 0.0
    %821 = vmatpush1.msra.mxu0 0.0
    %822 = vmatprep.subr.mxu0 0.0
    %823 = vmatpush1.msra.mxu0 0.0
    %824 = vmatprep.subr.mxu0 0.0
    %825 = vmatpush1.msra.mxu0 0.0
    %826 = vmatprep.subr.mxu0 0.0
    %827 = vmatpush1.msra.mxu0 0.0
    %828 = vmatprep.subr.mxu0 0.0
    %829 = vmatpush1.msra.mxu0 0.0
    %830 = vmatprep.subr.mxu0 0.0
    %831 = vmatpush1.msra.mxu0 0.0
    %832 = vmatprep.subr.mxu0 0.0
    %833 = vmatpush1.msra.mxu0 0.0
    %834 = vmatprep.subr.mxu0 0.0
    %835 = vmatpush1.msra.mxu0 0.0
    %836 = vmatprep.subr.mxu0 0.0
    %837 = vmatpush1.msra.mxu0 0.0
    %838 = vmatprep.subr.mxu0 0.0
    %839 = vmatpush1.msra.mxu0 0.0
    %840 = vmatprep.subr.mxu0 0.0
    %841 = vmatpush1.msra.mxu0 0.0
    %842 = vmatprep.subr.mxu0 0.0
    %843 = vmatpush1.msra.mxu0 0.0
    %844 = vmatprep.subr.mxu0 0.0
    %845 = vmatpush1.msra.mxu0 0.0
    %846 = vmatprep.subr.mxu0 0.0
    %847 = vmatpush1.msra.mxu0 0.0
    %848 = vmatprep.mubr.f32.mxu0 0.0
    %849 = vmatmul.mubr.f32.gmra.mrb[0].mxu0 %v782
    %v850 = vpop.f32.mrb[0].mxu0
    %v851 = vadd.f32 %v779, %v850
    %v852 = vpop.f32.mrb[0].mxu0
    %853 = vdwg.mxu0
    %v854 = vlaneseq
    %v855 = vshrl.u32 %v854, 7
    %v856 = vsub.s32 3, %v855
    %v857 = vrot.slane %v78, %v856
    %v858 = vadd.f32 %v851, %v857
    %859 = vst [vmem:[#allocation10] sm:$0xff] %v858
    // Predicated region
    $region30: #{tpu_custom_call.1} parent=1 // pred_check
      _
    $region31: #{tpu_custom_call.1} parent=1 // pred_check_branch
      %861 = sbr.rel (0) target = $region33
    $region32: #{tpu_custom_call.1} parent=1 // pred_region
      %s863 = ssub.s32 128, 128
      %864 = vsyncadd [#allocation6], %s863
      %s866 = sshll.u32 [#allocation10], 4
      %s867 = int_to_ptr.vmem [resolvable:$true] %s866
      %869 = dma.vmem_to_hbm [thread:$0]  %s867, 128, %s4, [#allocation6]
    $region33: #{tpu_custom_call.1} parent=1 // pred_fallthru
      _
    // Predicated region
    $region34: #{tpu_custom_call.1} parent=1 // pred_check
      _
    $region35: #{tpu_custom_call.1} parent=1 // pred_check_branch
      %871 = sbr.rel (0) target = $region37
    $region36: #{tpu_custom_call.1} parent=1 // pred_region
      %s873 = ssub.s32 128, 128
      %874 = vsyncadd [#allocation12], %s873
      %s876 = sshll.u32 [#allocation11], 4
      %s877 = int_to_ptr.vmem [resolvable:$true] %s876
      %879 = dma.vmem_to_hbm [thread:$0]  %s877, 128, %s5, [#allocation12]
    $region37: #{tpu_custom_call.1} parent=1 // pred_fallthru
      _
    // Predicated region
    $region38: #{tpu_custom_call.1} parent=1 // pred_check
      _
    $region39: #{tpu_custom_call.1} parent=1 // pred_check_branch
      %881 = sbr.rel (0) target = $region41
    $region40: #{tpu_custom_call.1} parent=1 // pred_region
      %882 = dma.done [#allocation6], 128
    $region41: #{tpu_custom_call.1} parent=1 // pred_fallthru
      _
    // Predicated region
    $region42: #{tpu_custom_call.1} parent=1 // pred_check
      _
    $region43: #{tpu_custom_call.1} parent=1 // pred_check_branch
      %884 = sbr.rel (0) target = $region45
    $region44: #{tpu_custom_call.1} parent=1 // pred_region
      %885 = dma.done [#allocation12], 128
    $region45: #{tpu_custom_call.1} parent=1 // pred_fallthru
      _
    %886 = vsyncpa [#allocation5], 1
    %887 = vsyncpa [#allocation8], 1
    %888 = vsyncpa [#allocation6], 1
    %889 = vsyncpa [#allocation12], 1

</llo_original>
